<compile_context>
chip_gen: v5e
topology: v5e:2x2
jax: 0.10.0
libtpu: 0.0.40
codegen_flags: <defaults>
</compile_context>

<pallas_src>
import functools

import jax
import jax.numpy as jnp
from jax.experimental import pallas as pl
from jax.experimental.pallas import tpu as pltpu


def _round_up(x: int, m: int) -> int:
    return ((x + m - 1) // m) * m


# ----------------------------- Pallas kernel ------------------------------- #
def _fused_mlp_kernel(x_ref, *refs, num_layers: int):
    """Fused multi-layer relu(x @ W_l + b_l) chain on one batch tile.

    refs = (w_0, b_0, w_1, b_1, ..., w_{L-1}, b_{L-1}, o_ref)
    All matmul operands are bf16, accumulation + epilogue in f32.
    """
    o_ref = refs[-1]
    h = x_ref[...]                                  # (TILE_B, d_in_pad) bf16
    acc = None
    for li in range(num_layers):                    # statically unrolled
        w_ref = refs[2 * li]
        b_ref = refs[2 * li + 1]
        acc = jnp.dot(h, w_ref[...], preferred_element_type=jnp.float32)
        acc = jnp.maximum(acc + b_ref[...], 0.0)    # f32 bias + ReLU epilogue
        if li + 1 < num_layers:
            h = acc.astype(jnp.bfloat16)            # bf16 hand-off to next MXU pass
    o_ref[...] = acc.astype(o_ref.dtype)


# ------------------------------ Kernel wrapper ------------------------------ #
def fused_mlp(x: jax.Array, layers, *, tile_b: int = 512) -> jax.Array:
    """x: (B, d_in) f32; layers: list of (W (d_in, d_out) f32, b (1, d_out) f32)."""
    batch, d_in = x.shape
    d_out = layers[0][0].shape[1] if layers else d_in
    d_in_pad = _round_up(d_in, 128)

    # Lane-pad every layer to 128-multiples; weights cast to bf16 for the MXU.
    padded_layers = []
    dims_pad = [d_in_pad]
    for (w, b) in layers:
        di, do = w.shape
        di_p, do_p = _round_up(di, 128), _round_up(do, 128)
        w_p = jnp.zeros((di_p, do_p), jnp.bfloat16).at[:di, :do].set(
            w.astype(jnp.bfloat16))
        b_p = jnp.zeros((1, do_p), jnp.float32).at[:, :do].set(b)
        padded_layers.append((w_p, b_p))
        dims_pad.append(do_p)
        d_out = do
    d_out_pad = dims_pad[-1]

    # Batch tiling: big tiles amortize per-step overhead; tiny batches are only
    # padded to the bf16 sublane quantum (16 rows).
    if batch > tile_b:
        b_pad = _round_up(batch, tile_b)
    else:
        b_pad = _round_up(batch, 16)
        tile_b = b_pad
    x_pad = jnp.zeros((b_pad, d_in_pad), jnp.bfloat16).at[:batch, :d_in].set(
        x.astype(jnp.bfloat16))

    # VMEM budget: double-buffered activation/output blocks + resident
    # weights/biases + per-layer intermediates.  Capped at 64 MiB (v7x VMEM).
    act_bytes = 2 * tile_b * d_in_pad * 2 + 2 * tile_b * d_out_pad * 4
    wgt_bytes = sum(w.size * 2 + b.size * 4 for w, b in padded_layers)
    mid_bytes = sum(tile_b * d * 6 for d in dims_pad[1:])   # f32 acc + bf16 copy
    vmem_limit = min(64 << 20, max(32 << 20,
                                   2 * (act_bytes + wgt_bytes + mid_bytes)))

    num_layers = len(layers)
    kernel = functools.partial(_fused_mlp_kernel, num_layers=num_layers)

    in_specs = [pl.BlockSpec((tile_b, d_in_pad), lambda i: (i, 0))]
    flat_inputs = [x_pad]
    for (w_p, b_p) in padded_layers:
        di_p, do_p = w_p.shape
        # Pinned blocks (same index every grid step) -> weights stay in VMEM.
        in_specs.append(pl.BlockSpec((di_p, do_p), lambda i: (0, 0)))
        in_specs.append(pl.BlockSpec((1, do_p), lambda i: (0, 0)))
        flat_inputs.extend([w_p, b_p])

    out_pad = pl.pallas_call(
        kernel,
        out_shape=jax.ShapeDtypeStruct((b_pad, d_out_pad), jnp.float32),
        grid=(b_pad // tile_b,),
        in_specs=in_specs,
        out_specs=pl.BlockSpec((tile_b, d_out_pad), lambda i: (i, 0)),
        compiler_params=pltpu.CompilerParams(
            dimension_semantics=("parallel",),
            vmem_limit_bytes=int(vmem_limit)),
    )(*flat_inputs)

    return out_pad[:batch, :d_out]


# --------------------------- Parameter creation ----------------------------- #
def xavier_normal(key, shape):
    """nn.init.xavier_normal_: std = sqrt(2 / (fan_in + fan_out))."""
    fan_in, fan_out = shape[0], shape[1]
    std = (2.0 / (fan_in + fan_out)) ** 0.5
    return std * jax.random.normal(key, shape, dtype=jnp.float32)


def init_mlp_params(key, user_count, item_count, embedding_dim, hidden_dims):
    keys = jax.random.split(key, 2 + 2 * max(len(hidden_dims), 1))
    params = {
        "user_embedding": xavier_normal(keys[0], (user_count, embedding_dim)),
        "item_embedding": xavier_normal(keys[1], (item_count, embedding_dim)),
        "user_biases": jnp.zeros((user_count, 1), jnp.float32),
        "item_biases": jnp.zeros((item_count, 1), jnp.float32),
        "layers": [],
    }
    full_dims = [2 * embedding_dim, *hidden_dims]
    for li, (d_in, d_out) in enumerate(zip(full_dims[:-1], full_dims[1:])):
        wk, bk = keys[2 + 2 * li], keys[3 + 2 * li]
        w = xavier_normal(wk, (d_in, d_out))      # stored (in, out)
        b = 0.001 * jax.random.normal(bk, (1, d_out), dtype=jnp.float32)
        params["layers"].append((w, b))
    return params


# ------------------------------ Forward pass -------------------------------- #
def mlp_forward(params, user_ids, item_ids):
    # Embedding gather + broadcast bias-add + concat stays in plain JAX glue.
    # TODO(synk): for production vocab/batch sizes, pull this gather into the
    # kernel via PrefetchScalarGridSpec + manual DMA row gather so the (B, 2D)
    # concat never materializes in HBM.
    user_emb = params["user_embedding"][user_ids] + params["user_biases"][user_ids]
    item_emb = params["item_embedding"][item_ids] + params["item_biases"][item_ids]
    hidden = jnp.concatenate([user_emb, item_emb], axis=-1)   # (B, 2*D)
    if not params["layers"]:
        return hidden
    return fused_mlp(hidden, params["layers"])


# ---------------------------------- Main ------------------------------------ #
if __name__ == "__main__":
    user_count = 10
    item_count = 15
    embedding_dim = 16
    hidden_dims = [32, 16]
    batch = 8

    key = jax.random.PRNGKey(0)
    pkey, ukey, ikey = jax.random.split(key, 3)

    params = init_mlp_params(pkey, user_count, item_count, embedding_dim, hidden_dims)
    user_ids = jax.random.randint(ukey, (batch,), 0, user_count, dtype=jnp.int32)
    item_ids = jax.random.randint(ikey, (batch,), 0, item_count, dtype=jnp.int32)

    fwd = jax.jit(mlp_forward)
    out = fwd(params, user_ids, item_ids)
    out = jax.block_until_ready(out)

    # Pure-JAX f32 reference of the same computation.
    ref = jnp.concatenate(
        [params["user_embedding"][user_ids] + params["user_biases"][user_ids],
         params["item_embedding"][item_ids] + params["item_biases"][item_ids]],
        axis=-1)
    for w, b in params["layers"]:
        ref = jnp.maximum(ref @ w + b, 0.0)

    assert out.shape == (batch, hidden_dims[-1])
    # bf16 matmul inputs -> ~0.4% relative error per layer; f32 accumulation.
    assert jnp.allclose(out, ref, atol=3e-2, rtol=3e-2), (
        float(jnp.max(jnp.abs(out - ref))))

    print("KERNEL_OK")
</pallas_src>

<mosaic_0001>
module attributes {stable_mosaic.version = 11 : i64} {
  func.func @_fused_mlp_kernel(%arg0: i32, %arg1: memref<16x128xbf16, #tpu.memory_space<vmem>>, %arg2: memref<128x128xbf16, #tpu.memory_space<vmem>>, %arg3: memref<1x128xf32, #tpu.memory_space<vmem>>, %arg4: memref<128x128xbf16, #tpu.memory_space<vmem>>, %arg5: memref<1x128xf32, #tpu.memory_space<vmem>>, %arg6: memref<16x128xf32, #tpu.memory_space<vmem>>) attributes {dimension_semantics = [#tpu.dimension_semantics<parallel>], iteration_bounds = array<i64: 1>, scalar_prefetch = 0 : i64, scratch_operands = 0 : i64, tpu.core_type = #tpu.core_type<tc>, window_params = [{transform_indices = @transform_0, window_bounds = array<i64: 16, 128>}, {pipeline_mode = #tpu.pipeline_mode<synchronous>, transform_indices = @transform_1, window_bounds = array<i64: 128, 128>}, {pipeline_mode = #tpu.pipeline_mode<synchronous>, transform_indices = @transform_2, window_bounds = array<i64: 1, 128>}, {pipeline_mode = #tpu.pipeline_mode<synchronous>, transform_indices = @transform_3, window_bounds = array<i64: 128, 128>}, {pipeline_mode = #tpu.pipeline_mode<synchronous>, transform_indices = @transform_4, window_bounds = array<i64: 1, 128>}, {transform_indices = @transform_5, window_bounds = array<i64: 16, 128>}]} {
    %c0 = arith.constant 0 : index
    %c0_0 = arith.constant 0 : index
    %0 = vector.load %arg1[%c0, %c0_0] : memref<16x128xbf16, #tpu.memory_space<vmem>>, vector<16x128xbf16>
    %c0_1 = arith.constant 0 : index
    %c0_2 = arith.constant 0 : index
    %1 = vector.load %arg2[%c0_1, %c0_2] : memref<128x128xbf16, #tpu.memory_space<vmem>>, vector<128x128xbf16>
    %cst = arith.constant dense<0.000000e+00> : vector<16x128xf32>
    %2 = tpu.matmul %0, %1, %cst {dimension_numbers = #tpu.dot_dimension_numbers<[1], [0], [0], [1], [0, 0, 1, 1], [], []>} : vector<16x128xbf16>, vector<128x128xbf16>, vector<16x128xf32> -> vector<16x128xf32>
    %c0_3 = arith.constant 0 : index
    %c0_4 = arith.constant 0 : index
    %3 = vector.load %arg3[%c0_3, %c0_4] : memref<1x128xf32, #tpu.memory_space<vmem>>, vector<1x128xf32>
    %4 = vector.broadcast %3 : vector<1x128xf32> to vector<16x128xf32>
    %5 = arith.addf %2, %4 : vector<16x128xf32>
    %cst_5 = arith.constant 0.000000e+00 : f32
    %6 = vector.broadcast %cst_5 : f32 to vector<16x128xf32>
    %7 = arith.maximumf %5, %6 : vector<16x128xf32>
    %8 = arith.truncf %7 : vector<16x128xf32> to vector<16x128xbf16>
    %c0_6 = arith.constant 0 : index
    %c0_7 = arith.constant 0 : index
    %9 = vector.load %arg4[%c0_6, %c0_7] : memref<128x128xbf16, #tpu.memory_space<vmem>>, vector<128x128xbf16>
    %cst_8 = arith.constant dense<0.000000e+00> : vector<16x128xf32>
    %10 = tpu.matmul %8, %9, %cst_8 {dimension_numbers = #tpu.dot_dimension_numbers<[1], [0], [0], [1], [0, 0, 1, 1], [], []>} : vector<16x128xbf16>, vector<128x128xbf16>, vector<16x128xf32> -> vector<16x128xf32>
    %c0_9 = arith.constant 0 : index
    %c0_10 = arith.constant 0 : index
    %11 = vector.load %arg5[%c0_9, %c0_10] : memref<1x128xf32, #tpu.memory_space<vmem>>, vector<1x128xf32>
    %12 = vector.broadcast %11 : vector<1x128xf32> to vector<16x128xf32>
    %13 = arith.addf %10, %12 : vector<16x128xf32>
    %cst_11 = arith.constant 0.000000e+00 : f32
    %14 = vector.broadcast %cst_11 : f32 to vector<16x128xf32>
    %15 = arith.maximumf %13, %14 : vector<16x128xf32>
    %c0_12 = arith.constant 0 : index
    %c0_13 = arith.constant 0 : index
    %16 = vector.load %arg6[%c0_12, %c0_13] : memref<16x128xf32, #tpu.memory_space<vmem>>, vector<16x128xf32>
    tpu.vector_store %arg6[%c0_12, %c0_13], %15 {strides = array<i32>} : memref<16x128xf32, #tpu.memory_space<vmem>>, vector<16x128xf32>,
    return
  }
  func.func @transform_0(%arg0: i32) -> (i32, i32) {
    %c0_i32 = arith.constant 0 : i32
    %c0_i32_0 = arith.constant 0 : i32
    return %arg0, %c0_i32 : i32, i32
  }
  func.func @transform_1(%arg0: i32) -> (i32, i32) {
    %c0_i32 = arith.constant 0 : i32
    %c0_i32_0 = arith.constant 0 : i32
    %c0_i32_1 = arith.constant 0 : i32
    return %c0_i32, %c0_i32_0 : i32, i32
  }
  func.func @transform_2(%arg0: i32) -> (i32, i32) {
    %c0_i32 = arith.constant 0 : i32
    %c0_i32_0 = arith.constant 0 : i32
    %c0_i32_1 = arith.constant 0 : i32
    return %c0_i32, %c0_i32_0 : i32, i32
  }
  func.func @transform_3(%arg0: i32) -> (i32, i32) {
    %c0_i32 = arith.constant 0 : i32
    %c0_i32_0 = arith.constant 0 : i32
    %c0_i32_1 = arith.constant 0 : i32
    return %c0_i32, %c0_i32_0 : i32, i32
  }
  func.func @transform_4(%arg0: i32) -> (i32, i32) {
    %c0_i32 = arith.constant 0 : i32
    %c0_i32_0 = arith.constant 0 : i32
    %c0_i32_1 = arith.constant 0 : i32
    return %c0_i32, %c0_i32_0 : i32, i32
  }
  func.func @transform_5(%arg0: i32) -> (i32, i32) {
    %c0_i32 = arith.constant 0 : i32
    %c0_i32_0 = arith.constant 0 : i32
    return %arg0, %c0_i32 : i32, i32
  }
}

</mosaic_0001>

<llo_original>
// kernel: mlp_forward.1
$region0: #{mlp_forward.1}
  #allocation0 [shape = 'u32[]', space=smem, size = 0x4, offset = 0x4, fixed_abs, tag = 'smem constant byte address 0x4 - core index']
  #allocation1 [shape = 'u32[72,128]{1,0:T(1,128)}', space=vmem, size = 0x9000, scoped, tag = 'internal scratch']
  %s0 = inlined_call_operand.vmem [shape: bf16[16,128], index: 0, kind: input, shape index: {}]
  %s1 = inlined_call_operand.vmem [shape: bf16[128,128], index: 1, kind: input, shape index: {}]
  %s2 = inlined_call_operand.vmem [shape: f32[1,128], index: 2, kind: input, shape index: {}]
  %s3 = inlined_call_operand.vmem [shape: bf16[128,128], index: 3, kind: input, shape index: {}]
  %s4 = inlined_call_operand.vmem [shape: f32[1,128], index: 4, kind: input, shape index: {}]
  %s5 = inlined_call_operand.vmem [shape: f32[16,128], index: 5, kind: output, shape index: {}]
  %s6 = sld [smem:[#allocation0]]
  $region30: #{mlp_forward.1} parent=0
    _
  %s8 = ssub.s32 1, %s6
  %s9 = scalar_select 0, %s8, %s6
  // Predicated region
  $region2: #{mlp_forward.1} parent=0 // pred_check
    _
  $region3: #{mlp_forward.1} parent=0 // pred_check_branch
    %11 = sbr.rel (0) target = $region5
  $region4: #{mlp_forward.1} parent=0 // pred_region
    _
  $region5: #{mlp_forward.1} parent=0 // pred_fallthru
    _
  // Predicated region
  $region6: #{mlp_forward.1} parent=0 // pred_check
    _
  $region7: #{mlp_forward.1} parent=0 // pred_check_branch
    %13 = sbr.rel (0) target = $region9
  $region8: #{mlp_forward.1} parent=0 // pred_region
    _
  $region9: #{mlp_forward.1} parent=0 // pred_fallthru
    _
  // Predicated region
  $region10: #{mlp_forward.1} parent=0 // pred_check
    _
  $region11: #{mlp_forward.1} parent=0 // pred_check_branch
    %15 = sbr.rel (0) target = $region13
  $region12: #{mlp_forward.1} parent=0 // pred_region
    _
  $region13: #{mlp_forward.1} parent=0 // pred_fallthru
    _
  // Predicated region
  $region14: #{mlp_forward.1} parent=0 // pred_check
    _
  $region15: #{mlp_forward.1} parent=0 // pred_check_branch
    %17 = sbr.rel (0) target = $region17
  $region16: #{mlp_forward.1} parent=0 // pred_region
    _
  $region17: #{mlp_forward.1} parent=0 // pred_fallthru
    _
  // Predicated region
  $region18: #{mlp_forward.1} parent=0 // pred_check
    _
  $region19: #{mlp_forward.1} parent=0 // pred_check_branch
    %19 = sbr.rel (0) target = $region21
  $region20: #{mlp_forward.1} parent=0 // pred_region
    _
  $region21: #{mlp_forward.1} parent=0 // pred_fallthru
    _
  %v20 = vld [vmem:[%s0] sm:$0xf]
  %v21 = vld [vmem:[%s0 + $0x4] sm:$0xf]
  %v22 = vld [vmem:[%s1] sm:$0xf]
  %v23 = vld [vmem:[%s1 + $0x4] sm:$0xf]
  %v24 = vld [vmem:[%s1 + $0x8] sm:$0xf]
  %v25 = vld [vmem:[%s1 + $0xc] sm:$0xf]
  %v26 = vld [vmem:[%s1 + $0x10] sm:$0xf]
  %v27 = vld [vmem:[%s1 + $0x14] sm:$0xf]
  %v28 = vld [vmem:[%s1 + $0x18] sm:$0xf]
  %v29 = vld [vmem:[%s1 + $0x1c] sm:$0xf]
  %v30 = vld [vmem:[%s1 + $0x20] sm:$0xf]
  %v31 = vld [vmem:[%s1 + $0x24] sm:$0xf]
  %v32 = vld [vmem:[%s1 + $0x28] sm:$0xf]
  %v33 = vld [vmem:[%s1 + $0x2c] sm:$0xf]
  %v34 = vld [vmem:[%s1 + $0x30] sm:$0xf]
  %v35 = vld [vmem:[%s1 + $0x34] sm:$0xf]
  %v36 = vld [vmem:[%s1 + $0x38] sm:$0xf]
  %v37 = vld [vmem:[%s1 + $0x3c] sm:$0xf]
  %v38 = vld [vmem:[%s2] sm:$0x1]
  %v40 = vperm.slane %v38, 0
  %v44 = vunpack.c.l.b16 %v20
  %v45 = vunpack.c.l.b16 %v21
  %v46 = vpack.c.b16 %v45, %v44
  %v64 = vunpack.c.l.b16 %v22
  %v65 = vunpack.c.l.b16 %v23
  %v66 = vunpack.c.l.b16 %v24
  %v67 = vunpack.c.l.b16 %v25
  %v68 = vunpack.c.l.b16 %v26
  %v69 = vunpack.c.l.b16 %v27
  %v70 = vunpack.c.l.b16 %v28
  %v71 = vunpack.c.l.b16 %v29
  %v72 = vunpack.c.l.b16 %v30
  %v73 = vunpack.c.l.b16 %v31
  %v74 = vunpack.c.l.b16 %v32
  %v75 = vunpack.c.l.b16 %v33
  %v76 = vunpack.c.l.b16 %v34
  %v77 = vunpack.c.l.b16 %v35
  %v78 = vunpack.c.l.b16 %v36
  %v79 = vunpack.c.l.b16 %v37
  %v80 = vpack.c.b16 %v65, %v64
  %v81 = vpack.c.b16 %v67, %v66
  %v82 = vpack.c.b16 %v69, %v68
  %v83 = vpack.c.b16 %v71, %v70
  %v84 = vpack.c.b16 %v73, %v72
  %v85 = vpack.c.b16 %v75, %v74
  %v86 = vpack.c.b16 %v77, %v76
  %v87 = vpack.c.b16 %v79, %v78
  %96 = vmatpush.bf16.msra.mxu0 %v87
  %97 = vmatpush.bf16.msra.mxu0 %v86
  %98 = vmatpush.bf16.msra.mxu0 %v85
  %99 = vmatpush.bf16.msra.mxu0 %v84
  %100 = vmatpush.bf16.msra.mxu0 %v83
  %101 = vmatpush.bf16.msra.mxu0 %v82
  %102 = vmatpush.bf16.msra.mxu0 %v81
  %103 = vmatpush.bf16.msra.mxu0 %v80
  %104 = vmatmul.bf16.gmra.mxu0 %v46
  %v105 = vpop.f32.mrf.mxu0
  %v106 = vadd.f32 %v40, %v105
  %v107 = vpop.f32.mrf.mxu0
  %v108 = vadd.f32 %v40, %v107
  %109 = vdwg.mxu0
  %v110 = vmax.f32 %v106, 0.0
  %v111 = vmax.f32 %v108, 0.0
  %v112 = vpack.c.bf16 %v111, %v110
  %v113 = vld [vmem:[%s3] sm:$0xf]
  %v114 = vld [vmem:[%s3 + $0x4] sm:$0xf]
  %v115 = vld [vmem:[%s3 + $0x8] sm:$0xf]
  %v116 = vld [vmem:[%s3 + $0xc] sm:$0xf]
  %v117 = vld [vmem:[%s3 + $0x10] sm:$0xf]
  %v118 = vld [vmem:[%s3 + $0x14] sm:$0xf]
  %v119 = vld [vmem:[%s3 + $0x18] sm:$0xf]
  %v120 = vld [vmem:[%s3 + $0x1c] sm:$0xf]
  %v121 = vld [vmem:[%s3 + $0x20] sm:$0xf]
  %v122 = vld [vmem:[%s3 + $0x24] sm:$0xf]
  %v123 = vld [vmem:[%s3 + $0x28] sm:$0xf]
  %v124 = vld [vmem:[%s3 + $0x2c] sm:$0xf]
  %v125 = vld [vmem:[%s3 + $0x30] sm:$0xf]
  %v126 = vld [vmem:[%s3 + $0x34] sm:$0xf]
  %v127 = vld [vmem:[%s3 + $0x38] sm:$0xf]
  %v128 = vld [vmem:[%s3 + $0x3c] sm:$0xf]
  %v129 = vld [vmem:[%s4] sm:$0x1]
  %v131 = vperm.slane %v129, 0
  %v149 = vunpack.c.l.b16 %v113
  %v150 = vunpack.c.l.b16 %v114
  %v151 = vunpack.c.l.b16 %v115
  %v152 = vunpack.c.l.b16 %v116
  %v153 = vunpack.c.l.b16 %v117
  %v154 = vunpack.c.l.b16 %v118
  %v155 = vunpack.c.l.b16 %v119
  %v156 = vunpack.c.l.b16 %v120
  %v157 = vunpack.c.l.b16 %v121
  %v158 = vunpack.c.l.b16 %v122
  %v159 = vunpack.c.l.b16 %v123
  %v160 = vunpack.c.l.b16 %v124
  %v161 = vunpack.c.l.b16 %v125
  %v162 = vunpack.c.l.b16 %v126
  %v163 = vunpack.c.l.b16 %v127
  %v164 = vunpack.c.l.b16 %v128
  %v165 = vpack.c.b16 %v150, %v149
  %v166 = vpack.c.b16 %v152, %v151
  %v167 = vpack.c.b16 %v154, %v153
  %v168 = vpack.c.b16 %v156, %v155
  %v169 = vpack.c.b16 %v158, %v157
  %v170 = vpack.c.b16 %v160, %v159
  %v171 = vpack.c.b16 %v162, %v161
  %v172 = vpack.c.b16 %v164, %v163
  %181 = vmatpush.bf16.msra.mxu0 %v172
  %182 = vmatpush.bf16.msra.mxu0 %v171
  %183 = vmatpush.bf16.msra.mxu0 %v170
  %184 = vmatpush.bf16.msra.mxu0 %v169
  %185 = vmatpush.bf16.msra.mxu0 %v168
  %186 = vmatpush.bf16.msra.mxu0 %v167
  %187 = vmatpush.bf16.msra.mxu0 %v166
  %188 = vmatpush.bf16.msra.mxu0 %v165
  %189 = vmatmul.bf16.gmra.mxu0 %v112
  %v190 = vpop.f32.mrf.mxu0
  %v191 = vadd.f32 %v131, %v190
  %v192 = vpop.f32.mrf.mxu0
  %v193 = vadd.f32 %v131, %v192
  %194 = vdwg.mxu0
  %v195 = vmax.f32 %v191, 0.0
  %v196 = vmax.f32 %v193, 0.0
  %197 = vst [vmem:[%s5] sm:$0xff] %v195
  %198 = vst [vmem:[%s5 + $0x8] sm:$0xff] %v196
  // Predicated region
  $region22: #{mlp_forward.1} parent=0 // pred_check
    _
  $region23: #{mlp_forward.1} parent=0 // pred_check_branch
    %200 = sbr.rel (0) target = $region25
  $region24: #{mlp_forward.1} parent=0 // pred_region
    _
  $region25: #{mlp_forward.1} parent=0 // pred_fallthru
    _
  // Predicated region
  $region26: #{mlp_forward.1} parent=0 // pred_check
    _
  $region27: #{mlp_forward.1} parent=0 // pred_check_branch
    %202 = sbr.rel (0) target = $region29
  $region28: #{mlp_forward.1} parent=0 // pred_region
    _
  $region29: #{mlp_forward.1} parent=0 // pred_fallthru
    _

</llo_original>
